<compile_context>
chip_gen: v5e
topology: v5e:2x2
jax: 0.10.0
libtpu: 0.0.40
codegen_flags: <defaults>
</compile_context>

<pallas_src>
import functools

import jax
import jax.numpy as jnp
from jax import lax
from jax.experimental import pallas as pl
from jax.experimental.pallas import tpu as pltpu


# --------------------------- fused RNN kernel ------------------------------


def rnn_fused_kernel(tok_ref, w_in_ref, b_gi_ref, w_h_ref, b_hn_ref,
                     w1_ref, b1_ref, wf_ref, bf_ref, out_ref):
    """Whole forward pass in one kernel.

    tok_ref : (T*B, 2) int32   col 0: token at time t       (row block t)
                               col 1: token at time T-1-t   (row block t)
    w_in_ref: (2V, 6H) f32     input weights, gate-major [r_f r_b z_f z_b n_f n_b];
                               rows 0:V forward dir, rows V:2V backward dir
    b_gi_ref: (1, 6H)  f32     bih (+ bhh for r/z gates), same column layout
    w_h_ref : (2H, 6H) f32     block-diagonal recurrent weights for h_cat=[hf|hb]
    b_hn_ref: (1, 2H)  f32     bhh of the n gate, [n_f | n_b]
    w1/b1/wf/bf                MLP head (fc[0] and final)
    out_ref : (B, OUT)
    """
    TB = tok_ref.shape[0]
    V2 = w_in_ref.shape[0]          # 2*V  (fwd one-hot | bwd one-hot)
    V = V2 // 2
    H2 = w_h_ref.shape[0]           # 2*H  (concat [h_fwd | h_bwd])
    H4 = 2 * H2                     # 4*H  (width of the r|z gate block)
    B = out_ref.shape[0]
    T = TB // B

    # ---- input-side gates for all timesteps & both directions: ONE GEMM ----
    # identity embedding => one_hot(token) @ W == W[token]; realize the gather
    # as a tiny one-hot matmul on the MXU, fully outside the serial loop.
    # Single iota/compare/select builds both directions' one-hots at once.
    tok = tok_ref[...]                                            # (T*B, 2)
    iota = lax.broadcasted_iota(jnp.int32, (TB, V2), 1)
    tgt = jnp.where(iota < V, tok[:, 0:1], tok[:, 1:2] + V)       # (T*B, 2V)
    oh = (iota == tgt).astype(jnp.float32)
    gi_all = jnp.dot(oh, w_in_ref[...],
                     preferred_element_type=jnp.float32) + b_gi_ref[...]

    # ---- serial bidirectional GRU recurrence: one fused MXU push per step --
    w_h = w_h_ref[...]
    b_hn = jnp.broadcast_to(b_hn_ref[...], (B, H2))               # hoisted

    h = jnp.zeros((B, H2), jnp.float32)
    for t in range(T):                                            # fully unrolled
        gi = gi_all[t * B:(t + 1) * B, :]                         # static slice
        gh = jnp.dot(h, w_h, preferred_element_type=jnp.float32)
        rz = jax.nn.sigmoid(gi[:, :H4] + gh[:, :H4])
        r, z = rz[:, :H2], rz[:, H2:]
        n = jnp.tanh(gi[:, H4:] + r * (gh[:, H4:] + b_hn))
        h = (1.0 - z) * n + z * h

    # ---- MLP head (fc -> relu -> final) fused into the same kernel ---------
    hid = jnp.dot(h, w1_ref[...], preferred_element_type=jnp.float32) + b1_ref[...]
    hid = jnp.maximum(hid, 0.0)                                   # F.relu
    out_ref[...] = jnp.dot(hid, wf_ref[...],
                           preferred_element_type=jnp.float32) + bf_ref[...]


# ----------------------- parameter / input repacking -----------------------


def _pack_gru_params(p, H):
    """Repack per-direction PyTorch-layout GRU weights into the fused layout."""

    def spread_cols(w, backward):
        # (in, 3H) [r z n] -> (in, 6H) gate-major [r_f r_b z_f z_b n_f n_b]
        zero = jnp.zeros((w.shape[0], H), w.dtype)
        r, z, n = w[:, 0:H], w[:, H:2 * H], w[:, 2 * H:3 * H]
        cols = [zero, r, zero, z, zero, n] if backward else [r, zero, z, zero, n, zero]
        return jnp.concatenate(cols, axis=-1)

    w_in = jnp.concatenate([spread_cols(p["wih_f"], False),
                            spread_cols(p["wih_b"], True)], axis=0)     # (2V, 6H)
    w_h = jnp.concatenate([spread_cols(p["whh_f"], False),
                           spread_cols(p["whh_b"], True)], axis=0)      # (2H, 6H)

    bif, bhf = p["bih_f"], p["bhh_f"]
    bib, bhb = p["bih_b"], p["bhh_b"]
    b_gi = jnp.concatenate([
        bif[:, 0:H] + bhf[:, 0:H],            # r_f: bih_r + bhh_r (both additive)
        bib[:, 0:H] + bhb[:, 0:H],            # r_b
        bif[:, H:2 * H] + bhf[:, H:2 * H],    # z_f
        bib[:, H:2 * H] + bhb[:, H:2 * H],    # z_b
        bif[:, 2 * H:3 * H],                  # n_f: input-side bias only
        bib[:, 2 * H:3 * H],                  # n_b
    ], axis=-1)                               # (1, 6H)
    b_hn = jnp.concatenate([bhf[:, 2 * H:3 * H], bhb[:, 2 * H:3 * H]], axis=-1)
    return w_in, w_h, b_gi, b_hn


def _time_major_token_table(tokens):
    """(B, T) int -> (T*B, 2) int32: col 0 = token[b, t], col 1 = token[b, T-1-t]."""
    B, T = tokens.shape
    fwd = tokens.T.reshape(T * B)
    bwd = tokens[:, ::-1].T.reshape(T * B)
    return jnp.stack([fwd, bwd], axis=-1).astype(jnp.int32)


# ----------------------------- full forward --------------------------------


def rnn_forward(tokens, params, n_vocab):
    del n_vocab  # identity embedding: vocab size is carried by the weight shapes
    B, T = tokens.shape
    H = params["whh_f"].shape[0]
    OUT = params["wf"].shape[1]

    w_in, w_h, b_gi, b_hn = _pack_gru_params(params, H)
    tok2 = _time_major_token_table(tokens)

    return pl.pallas_call(
        rnn_fused_kernel,
        out_shape=jax.ShapeDtypeStruct((B, OUT), jnp.float32),
    )(tok2, w_in, b_gi, w_h, b_hn,
      params["w1"], params["b1"], params["wf"], params["bf"])


# ----------------------------- pure-JAX reference ---------------------------


def _gru_cell_ref(x, h, wih, whh, bih, bhh):
    H = h.shape[-1]
    gi = x @ wih + bih
    gh = h @ whh + bhh
    r = jax.nn.sigmoid(gi[:, :H] + gh[:, :H])
    z = jax.nn.sigmoid(gi[:, H:2 * H] + gh[:, H:2 * H])
    n = jnp.tanh(gi[:, 2 * H:] + r * gh[:, 2 * H:])
    return (1.0 - z) * n + z * h


def rnn_forward_ref(tokens, params, n_vocab):
    x = jax.nn.one_hot(tokens, n_vocab, dtype=jnp.float32)
    x_tm = jnp.transpose(x, (1, 0, 2))
    B = tokens.shape[0]
    H = params["whh_f"].shape[0]

    def run(xseq, wih, whh, bih, bhh):
        def step(h, xt):
            return _gru_cell_ref(xt, h, wih, whh, bih, bhh), None
        h0 = jnp.zeros((B, H), jnp.float32)
        hT, _ = lax.scan(step, h0, xseq)
        return hT

    hf = run(x_tm, params["wih_f"], params["whh_f"], params["bih_f"], params["bhh_f"])
    hb = run(x_tm[::-1], params["wih_b"], params["whh_b"], params["bih_b"], params["bhh_b"])
    h = jnp.concatenate([hf, hb], axis=-1)
    h = jnp.maximum(h @ params["w1"] + params["b1"], 0.0)
    return h @ params["wf"] + params["bf"]


# ----------------------------- main -----------------------------------------


if __name__ == "__main__":
    B, T, V, H, OUT = 2, 8, 16, 32, 4

    key = jax.random.PRNGKey(0)
    keys = jax.random.split(key, 16)

    def init(k, shape, scale=0.1):
        return scale * jax.random.normal(k, shape, dtype=jnp.float32)

    params = {
        # forward direction GRU weights (stored as W.T relative to PyTorch: (in, 3H))
        "wih_f": init(keys[0], (V, 3 * H)),
        "whh_f": init(keys[1], (H, 3 * H)),
        "bih_f": init(keys[2], (1, 3 * H)),
        "bhh_f": init(keys[3], (1, 3 * H)),
        # backward direction GRU weights
        "wih_b": init(keys[4], (V, 3 * H)),
        "whh_b": init(keys[5], (H, 3 * H)),
        "bih_b": init(keys[6], (1, 3 * H)),
        "bhh_b": init(keys[7], (1, 3 * H)),
        # fc[0]: Linear(hid_dim=2H, GRU_dim=H), final: Linear(H, out_dim)
        "w1": init(keys[8], (2 * H, H)),
        "b1": init(keys[9], (1, H)),
        "wf": init(keys[10], (H, OUT)),
        "bf": init(keys[11], (1, OUT)),
    }

    tokens = jax.random.randint(keys[12], (B, T), 0, V, dtype=jnp.int32)

    fwd = jax.jit(functools.partial(rnn_forward, n_vocab=V))
    out = jax.block_until_ready(fwd(tokens, params))

    ref = rnn_forward_ref(tokens, params, V)
    assert out.shape == (B, OUT), out.shape
    assert jnp.allclose(out, ref, atol=1e-4, rtol=1e-4), (out, ref)

    print("KERNEL_OK")
</pallas_src>

<mosaic_0001>
module attributes {stable_mosaic.version = 11 : i64} {
  func.func @rnn_fused_kernel(%arg0: memref<16x2xi32, #tpu.memory_space<vmem>>, %arg1: memref<32x192xf32, #tpu.memory_space<vmem>>, %arg2: memref<1x192xf32, #tpu.memory_space<vmem>>, %arg3: memref<64x192xf32, #tpu.memory_space<vmem>>, %arg4: memref<1x64xf32, #tpu.memory_space<vmem>>, %arg5: memref<64x32xf32, #tpu.memory_space<vmem>>, %arg6: memref<1x32xf32, #tpu.memory_space<vmem>>, %arg7: memref<32x4xf32, #tpu.memory_space<vmem>>, %arg8: memref<1x4xf32, #tpu.memory_space<vmem>>, %arg9: memref<2x4xf32, #tpu.memory_space<vmem>>) attributes {dimension_semantics = [], scalar_prefetch = 0 : i64, scratch_operands = 0 : i64, tpu.core_type = #tpu.core_type<tc>} {
    %c0 = arith.constant 0 : index
    %c0_0 = arith.constant 0 : index
    %0 = vector.load %arg0[%c0, %c0_0] : memref<16x2xi32, #tpu.memory_space<vmem>>, vector<16x2xi32>
    %1 = tpu.iota {dimensions = array<i32: 1>} : vector<16x32xi32>
    %c16_i32 = arith.constant 16 : i32
    %2 = vector.broadcast %c16_i32 : i32 to vector<16x32xi32>
    %3 = arith.cmpi slt, %1, %2 : vector<16x32xi32>
    %4 = vector.extract_strided_slice %0 {offsets = [0, 0], sizes = [16, 1], strides = [1, 1]} : vector<16x2xi32> to vector<16x1xi32>
    %5 = vector.extract_strided_slice %0 {offsets = [0, 1], sizes = [16, 1], strides = [1, 1]} : vector<16x2xi32> to vector<16x1xi32>
    %c16_i32_1 = arith.constant 16 : i32
    %6 = vector.broadcast %c16_i32_1 : i32 to vector<16x1xi32>
    %7 = arith.addi %5, %6 : vector<16x1xi32>
    %8 = vector.shape_cast %4 : vector<16x1xi32> to vector<16x1xi32>
    %9 = vector.broadcast %8 : vector<16x1xi32> to vector<16x32xi32>
    %10 = vector.shape_cast %7 : vector<16x1xi32> to vector<16x1xi32>
    %11 = vector.broadcast %10 : vector<16x1xi32> to vector<16x32xi32>
    %12 = arith.select %3, %9, %11 : vector<16x32xi1>, vector<16x32xi32>
    %13 = arith.cmpi eq, %1, %12 : vector<16x32xi32>
    %14 = arith.extui %13 : vector<16x32xi1> to vector<16x32xi32>
    %15 = arith.sitofp %14 : vector<16x32xi32> to vector<16x32xf32>
    %c0_2 = arith.constant 0 : index
    %c0_3 = arith.constant 0 : index
    %16 = vector.load %arg1[%c0_2, %c0_3] : memref<32x192xf32, #tpu.memory_space<vmem>>, vector<32x192xf32>
    %cst = arith.constant dense<0.000000e+00> : vector<16x192xf32>
    %17 = tpu.matmul %15, %16, %cst {dimension_numbers = #tpu.dot_dimension_numbers<[1], [0], [0], [1], [0, 0, 1, 1], [], []>} : vector<16x32xf32>, vector<32x192xf32>, vector<16x192xf32> -> vector<16x192xf32>
    %c0_4 = arith.constant 0 : index
    %c0_5 = arith.constant 0 : index
    %18 = vector.load %arg2[%c0_4, %c0_5] : memref<1x192xf32, #tpu.memory_space<vmem>>, vector<1x192xf32>
    %19 = vector.broadcast %18 : vector<1x192xf32> to vector<16x192xf32>
    %20 = arith.addf %17, %19 : vector<16x192xf32>
    %c0_6 = arith.constant 0 : index
    %c0_7 = arith.constant 0 : index
    %21 = vector.load %arg3[%c0_6, %c0_7] : memref<64x192xf32, #tpu.memory_space<vmem>>, vector<64x192xf32>
    %c0_8 = arith.constant 0 : index
    %c0_9 = arith.constant 0 : index
    %22 = vector.load %arg4[%c0_8, %c0_9] : memref<1x64xf32, #tpu.memory_space<vmem>>, vector<1x64xf32>
    %23 = vector.shape_cast %22 : vector<1x64xf32> to vector<1x64xf32>
    %24 = vector.broadcast %23 : vector<1x64xf32> to vector<2x64xf32>
    %cst_10 = arith.constant 0.000000e+00 : f32
    %25 = vector.broadcast %cst_10 : f32 to vector<2x64xf32>
    %26 = vector.extract_strided_slice %20 {offsets = [0, 0], sizes = [2, 192], strides = [1, 1]} : vector<16x192xf32> to vector<2x192xf32>
    %cst_11 = arith.constant dense<0.000000e+00> : vector<2x192xf32>
    %27 = tpu.matmul %25, %21, %cst_11 {dimension_numbers = #tpu.dot_dimension_numbers<[1], [0], [0], [1], [0, 0, 1, 1], [], []>} : vector<2x64xf32>, vector<64x192xf32>, vector<2x192xf32> -> vector<2x192xf32>
    %28 = vector.extract_strided_slice %26 {offsets = [0, 0], sizes = [2, 128], strides = [1, 1]} : vector<2x192xf32> to vector<2x128xf32>
    %29 = vector.extract_strided_slice %27 {offsets = [0, 0], sizes = [2, 128], strides = [1, 1]} : vector<2x192xf32> to vector<2x128xf32>
    %30 = arith.addf %28, %29 : vector<2x128xf32>
    %31 = arith.negf %30 : vector<2x128xf32>
    %32 = math.exp %31 : vector<2x128xf32>
    %cst_12 = arith.constant 1.000000e+00 : f32
    %33 = vector.broadcast %cst_12 : f32 to vector<2x128xf32>
    %34 = arith.addf %33, %32 : vector<2x128xf32>
    %35 = arith.divf %33, %34 : vector<2x128xf32>
    %36 = vector.extract_strided_slice %35 {offsets = [0, 0], sizes = [2, 64], strides = [1, 1]} : vector<2x128xf32> to vector<2x64xf32>
    %37 = vector.extract_strided_slice %35 {offsets = [0, 64], sizes = [2, 64], strides = [1, 1]} : vector<2x128xf32> to vector<2x64xf32>
    %38 = vector.extract_strided_slice %26 {offsets = [0, 128], sizes = [2, 64], strides = [1, 1]} : vector<2x192xf32> to vector<2x64xf32>
    %39 = vector.extract_strided_slice %27 {offsets = [0, 128], sizes = [2, 64], strides = [1, 1]} : vector<2x192xf32> to vector<2x64xf32>
    %40 = arith.addf %39, %24 : vector<2x64xf32>
    %41 = arith.mulf %36, %40 : vector<2x64xf32>
    %42 = arith.addf %38, %41 : vector<2x64xf32>
    %43 = math.tanh %42 : vector<2x64xf32>
    %cst_13 = arith.constant 1.000000e+00 : f32
    %44 = vector.broadcast %cst_13 : f32 to vector<2x64xf32>
    %45 = arith.subf %44, %37 : vector<2x64xf32>
    %46 = arith.mulf %45, %43 : vector<2x64xf32>
    %47 = arith.mulf %37, %25 : vector<2x64xf32>
    %48 = arith.addf %46, %47 : vector<2x64xf32>
    %49 = vector.extract_strided_slice %20 {offsets = [2, 0], sizes = [2, 192], strides = [1, 1]} : vector<16x192xf32> to vector<2x192xf32>
    %cst_14 = arith.constant dense<0.000000e+00> : vector<2x192xf32>
    %50 = tpu.matmul %48, %21, %cst_14 {dimension_numbers = #tpu.dot_dimension_numbers<[1], [0], [0], [1], [0, 0, 1, 1], [], []>} : vector<2x64xf32>, vector<64x192xf32>, vector<2x192xf32> -> vector<2x192xf32>
    %51 = vector.extract_strided_slice %49 {offsets = [0, 0], sizes = [2, 128], strides = [1, 1]} : vector<2x192xf32> to vector<2x128xf32>
    %52 = vector.extract_strided_slice %50 {offsets = [0, 0], sizes = [2, 128], strides = [1, 1]} : vector<2x192xf32> to vector<2x128xf32>
    %53 = arith.addf %51, %52 : vector<2x128xf32>
    %54 = arith.negf %53 : vector<2x128xf32>
    %55 = math.exp %54 : vector<2x128xf32>
    %cst_15 = arith.constant 1.000000e+00 : f32
    %56 = vector.broadcast %cst_15 : f32 to vector<2x128xf32>
    %57 = arith.addf %56, %55 : vector<2x128xf32>
    %58 = arith.divf %56, %57 : vector<2x128xf32>
    %59 = vector.extract_strided_slice %58 {offsets = [0, 0], sizes = [2, 64], strides = [1, 1]} : vector<2x128xf32> to vector<2x64xf32>
    %60 = vector.extract_strided_slice %58 {offsets = [0, 64], sizes = [2, 64], strides = [1, 1]} : vector<2x128xf32> to vector<2x64xf32>
    %61 = vector.extract_strided_slice %49 {offsets = [0, 128], sizes = [2, 64], strides = [1, 1]} : vector<2x192xf32> to vector<2x64xf32>
    %62 = vector.extract_strided_slice %50 {offsets = [0, 128], sizes = [2, 64], strides = [1, 1]} : vector<2x192xf32> to vector<2x64xf32>
    %63 = arith.addf %62, %24 : vector<2x64xf32>
    %64 = arith.mulf %59, %63 : vector<2x64xf32>
    %65 = arith.addf %61, %64 : vector<2x64xf32>
    %66 = math.tanh %65 : vector<2x64xf32>
    %cst_16 = arith.constant 1.000000e+00 : f32
    %67 = vector.broadcast %cst_16 : f32 to vector<2x64xf32>
    %68 = arith.subf %67, %60 : vector<2x64xf32>
    %69 = arith.mulf %68, %66 : vector<2x64xf32>
    %70 = arith.mulf %60, %48 : vector<2x64xf32>
    %71 = arith.addf %69, %70 : vector<2x64xf32>
    %72 = vector.extract_strided_slice %20 {offsets = [4, 0], sizes = [2, 192], strides = [1, 1]} : vector<16x192xf32> to vector<2x192xf32>
    %cst_17 = arith.constant dense<0.000000e+00> : vector<2x192xf32>
    %73 = tpu.matmul %71, %21, %cst_17 {dimension_numbers = #tpu.dot_dimension_numbers<[1], [0], [0], [1], [0, 0, 1, 1], [], []>} : vector<2x64xf32>, vector<64x192xf32>, vector<2x192xf32> -> vector<2x192xf32>
    %74 = vector.extract_strided_slice %72 {offsets = [0, 0], sizes = [2, 128], strides = [1, 1]} : vector<2x192xf32> to vector<2x128xf32>
    %75 = vector.extract_strided_slice %73 {offsets = [0, 0], sizes = [2, 128], strides = [1, 1]} : vector<2x192xf32> to vector<2x128xf32>
    %76 = arith.addf %74, %75 : vector<2x128xf32>
    %77 = arith.negf %76 : vector<2x128xf32>
    %78 = math.exp %77 : vector<2x128xf32>
    %cst_18 = arith.constant 1.000000e+00 : f32
    %79 = vector.broadcast %cst_18 : f32 to vector<2x128xf32>
    %80 = arith.addf %79, %78 : vector<2x128xf32>
    %81 = arith.divf %79, %80 : vector<2x128xf32>
    %82 = vector.extract_strided_slice %81 {offsets = [0, 0], sizes = [2, 64], strides = [1, 1]} : vector<2x128xf32> to vector<2x64xf32>
    %83 = vector.extract_strided_slice %81 {offsets = [0, 64], sizes = [2, 64], strides = [1, 1]} : vector<2x128xf32> to vector<2x64xf32>
    %84 = vector.extract_strided_slice %72 {offsets = [0, 128], sizes = [2, 64], strides = [1, 1]} : vector<2x192xf32> to vector<2x64xf32>
    %85 = vector.extract_strided_slice %73 {offsets = [0, 128], sizes = [2, 64], strides = [1, 1]} : vector<2x192xf32> to vector<2x64xf32>
    %86 = arith.addf %85, %24 : vector<2x64xf32>
    %87 = arith.mulf %82, %86 : vector<2x64xf32>
    %88 = arith.addf %84, %87 : vector<2x64xf32>
    %89 = math.tanh %88 : vector<2x64xf32>
    %cst_19 = arith.constant 1.000000e+00 : f32
    %90 = vector.broadcast %cst_19 : f32 to vector<2x64xf32>
    %91 = arith.subf %90, %83 : vector<2x64xf32>
    %92 = arith.mulf %91, %89 : vector<2x64xf32>
    %93 = arith.mulf %83, %71 : vector<2x64xf32>
    %94 = arith.addf %92, %93 : vector<2x64xf32>
    %95 = vector.extract_strided_slice %20 {offsets = [6, 0], sizes = [2, 192], strides = [1, 1]} : vector<16x192xf32> to vector<2x192xf32>
    %cst_20 = arith.constant dense<0.000000e+00> : vector<2x192xf32>
    %96 = tpu.matmul %94, %21, %cst_20 {dimension_numbers = #tpu.dot_dimension_numbers<[1], [0], [0], [1], [0, 0, 1, 1], [], []>} : vector<2x64xf32>, vector<64x192xf32>, vector<2x192xf32> -> vector<2x192xf32>
    %97 = vector.extract_strided_slice %95 {offsets = [0, 0], sizes = [2, 128], strides = [1, 1]} : vector<2x192xf32> to vector<2x128xf32>
    %98 = vector.extract_strided_slice %96 {offsets = [0, 0], sizes = [2, 128], strides = [1, 1]} : vector<2x192xf32> to vector<2x128xf32>
    %99 = arith.addf %97, %98 : vector<2x128xf32>
    %100 = arith.negf %99 : vector<2x128xf32>
    %101 = math.exp %100 : vector<2x128xf32>
    %cst_21 = arith.constant 1.000000e+00 : f32
    %102 = vector.broadcast %cst_21 : f32 to vector<2x128xf32>
    %103 = arith.addf %102, %101 : vector<2x128xf32>
    %104 = arith.divf %102, %103 : vector<2x128xf32>
    %105 = vector.extract_strided_slice %104 {offsets = [0, 0], sizes = [2, 64], strides = [1, 1]} : vector<2x128xf32> to vector<2x64xf32>
    %106 = vector.extract_strided_slice %104 {offsets = [0, 64], sizes = [2, 64], strides = [1, 1]} : vector<2x128xf32> to vector<2x64xf32>
    %107 = vector.extract_strided_slice %95 {offsets = [0, 128], sizes = [2, 64], strides = [1, 1]} : vector<2x192xf32> to vector<2x64xf32>
    %108 = vector.extract_strided_slice %96 {offsets = [0, 128], sizes = [2, 64], strides = [1, 1]} : vector<2x192xf32> to vector<2x64xf32>
    %109 = arith.addf %108, %24 : vector<2x64xf32>
    %110 = arith.mulf %105, %109 : vector<2x64xf32>
    %111 = arith.addf %107, %110 : vector<2x64xf32>
    %112 = math.tanh %111 : vector<2x64xf32>
    %cst_22 = arith.constant 1.000000e+00 : f32
    %113 = vector.broadcast %cst_22 : f32 to vector<2x64xf32>
    %114 = arith.subf %113, %106 : vector<2x64xf32>
    %115 = arith.mulf %114, %112 : vector<2x64xf32>
    %116 = arith.mulf %106, %94 : vector<2x64xf32>
    %117 = arith.addf %115, %116 : vector<2x64xf32>
    %118 = vector.extract_strided_slice %20 {offsets = [8, 0], sizes = [2, 192], strides = [1, 1]} : vector<16x192xf32> to vector<2x192xf32>
    %cst_23 = arith.constant dense<0.000000e+00> : vector<2x192xf32>
    %119 = tpu.matmul %117, %21, %cst_23 {dimension_numbers = #tpu.dot_dimension_numbers<[1], [0], [0], [1], [0, 0, 1, 1], [], []>} : vector<2x64xf32>, vector<64x192xf32>, vector<2x192xf32> -> vector<2x192xf32>
    %120 = vector.extract_strided_slice %118 {offsets = [0, 0], sizes = [2, 128], strides = [1, 1]} : vector<2x192xf32> to vector<2x128xf32>
    %121 = vector.extract_strided_slice %119 {offsets = [0, 0], sizes = [2, 128], strides = [1, 1]} : vector<2x192xf32> to vector<2x128xf32>
    %122 = arith.addf %120, %121 : vector<2x128xf32>
    %123 = arith.negf %122 : vector<2x128xf32>
    %124 = math.exp %123 : vector<2x128xf32>
    %cst_24 = arith.constant 1.000000e+00 : f32
    %125 = vector.broadcast %cst_24 : f32 to vector<2x128xf32>
    %126 = arith.addf %125, %124 : vector<2x128xf32>
    %127 = arith.divf %125, %126 : vector<2x128xf32>
    %128 = vector.extract_strided_slice %127 {offsets = [0, 0], sizes = [2, 64], strides = [1, 1]} : vector<2x128xf32> to vector<2x64xf32>
    %129 = vector.extract_strided_slice %127 {offsets = [0, 64], sizes = [2, 64], strides = [1, 1]} : vector<2x128xf32> to vector<2x64xf32>
    %130 = vector.extract_strided_slice %118 {offsets = [0, 128], sizes = [2, 64], strides = [1, 1]} : vector<2x192xf32> to vector<2x64xf32>
    %131 = vector.extract_strided_slice %119 {offsets = [0, 128], sizes = [2, 64], strides = [1, 1]} : vector<2x192xf32> to vector<2x64xf32>
    %132 = arith.addf %131, %24 : vector<2x64xf32>
    %133 = arith.mulf %128, %132 : vector<2x64xf32>
    %134 = arith.addf %130, %133 : vector<2x64xf32>
    %135 = math.tanh %134 : vector<2x64xf32>
    %cst_25 = arith.constant 1.000000e+00 : f32
    %136 = vector.broadcast %cst_25 : f32 to vector<2x64xf32>
    %137 = arith.subf %136, %129 : vector<2x64xf32>
    %138 = arith.mulf %137, %135 : vector<2x64xf32>
    %139 = arith.mulf %129, %117 : vector<2x64xf32>
    %140 = arith.addf %138, %139 : vector<2x64xf32>
    %141 = vector.extract_strided_slice %20 {offsets = [10, 0], sizes = [2, 192], strides = [1, 1]} : vector<16x192xf32> to vector<2x192xf32>
    %cst_26 = arith.constant dense<0.000000e+00> : vector<2x192xf32>
    %142 = tpu.matmul %140, %21, %cst_26 {dimension_numbers = #tpu.dot_dimension_numbers<[1], [0], [0], [1], [0, 0, 1, 1], [], []>} : vector<2x64xf32>, vector<64x192xf32>, vector<2x192xf32> -> vector<2x192xf32>
    %143 = vector.extract_strided_slice %141 {offsets = [0, 0], sizes = [2, 128], strides = [1, 1]} : vector<2x192xf32> to vector<2x128xf32>
    %144 = vector.extract_strided_slice %142 {offsets = [0, 0], sizes = [2, 128], strides = [1, 1]} : vector<2x192xf32> to vector<2x128xf32>
    %145 = arith.addf %143, %144 : vector<2x128xf32>
    %146 = arith.negf %145 : vector<2x128xf32>
    %147 = math.exp %146 : vector<2x128xf32>
    %cst_27 = arith.constant 1.000000e+00 : f32
    %148 = vector.broadcast %cst_27 : f32 to vector<2x128xf32>
    %149 = arith.addf %148, %147 : vector<2x128xf32>
    %150 = arith.divf %148, %149 : vector<2x128xf32>
    %151 = vector.extract_strided_slice %150 {offsets = [0, 0], sizes = [2, 64], strides = [1, 1]} : vector<2x128xf32> to vector<2x64xf32>
    %152 = vector.extract_strided_slice %150 {offsets = [0, 64], sizes = [2, 64], strides = [1, 1]} : vector<2x128xf32> to vector<2x64xf32>
    %153 = vector.extract_strided_slice %141 {offsets = [0, 128], sizes = [2, 64], strides = [1, 1]} : vector<2x192xf32> to vector<2x64xf32>
    %154 = vector.extract_strided_slice %142 {offsets = [0, 128], sizes = [2, 64], strides = [1, 1]} : vector<2x192xf32> to vector<2x64xf32>
    %155 = arith.addf %154, %24 : vector<2x64xf32>
    %156 = arith.mulf %151, %155 : vector<2x64xf32>
    %157 = arith.addf %153, %156 : vector<2x64xf32>
    %158 = math.tanh %157 : vector<2x64xf32>
    %cst_28 = arith.constant 1.000000e+00 : f32
    %159 = vector.broadcast %cst_28 : f32 to vector<2x64xf32>
    %160 = arith.subf %159, %152 : vector<2x64xf32>
    %161 = arith.mulf %160, %158 : vector<2x64xf32>
    %162 = arith.mulf %152, %140 : vector<2x64xf32>
    %163 = arith.addf %161, %162 : vector<2x64xf32>
    %164 = vector.extract_strided_slice %20 {offsets = [12, 0], sizes = [2, 192], strides = [1, 1]} : vector<16x192xf32> to vector<2x192xf32>
    %cst_29 = arith.constant dense<0.000000e+00> : vector<2x192xf32>
    %165 = tpu.matmul %163, %21, %cst_29 {dimension_numbers = #tpu.dot_dimension_numbers<[1], [0], [0], [1], [0, 0, 1, 1], [], []>} : vector<2x64xf32>, vector<64x192xf32>, vector<2x192xf32> -> vector<2x192xf32>
    %166 = vector.extract_strided_slice %164 {offsets = [0, 0], sizes = [2, 128], strides = [1, 1]} : vector<2x192xf32> to vector<2x128xf32>
    %167 = vector.extract_strided_slice %165 {offsets = [0, 0], sizes = [2, 128], strides = [1, 1]} : vector<2x192xf32> to vector<2x128xf32>
    %168 = arith.addf %166, %167 : vector<2x128xf32>
    %169 = arith.negf %168 : vector<2x128xf32>
    %170 = math.exp %169 : vector<2x128xf32>
    %cst_30 = arith.constant 1.000000e+00 : f32
    %171 = vector.broadcast %cst_30 : f32 to vector<2x128xf32>
    %172 = arith.addf %171, %170 : vector<2x128xf32>
    %173 = arith.divf %171, %172 : vector<2x128xf32>
    %174 = vector.extract_strided_slice %173 {offsets = [0, 0], sizes = [2, 64], strides = [1, 1]} : vector<2x128xf32> to vector<2x64xf32>
    %175 = vector.extract_strided_slice %173 {offsets = [0, 64], sizes = [2, 64], strides = [1, 1]} : vector<2x128xf32> to vector<2x64xf32>
    %176 = vector.extract_strided_slice %164 {offsets = [0, 128], sizes = [2, 64], strides = [1, 1]} : vector<2x192xf32> to vector<2x64xf32>
    %177 = vector.extract_strided_slice %165 {offsets = [0, 128], sizes = [2, 64], strides = [1, 1]} : vector<2x192xf32> to vector<2x64xf32>
    %178 = arith.addf %177, %24 : vector<2x64xf32>
    %179 = arith.mulf %174, %178 : vector<2x64xf32>
    %180 = arith.addf %176, %179 : vector<2x64xf32>
    %181 = math.tanh %180 : vector<2x64xf32>
    %cst_31 = arith.constant 1.000000e+00 : f32
    %182 = vector.broadcast %cst_31 : f32 to vector<2x64xf32>
    %183 = arith.subf %182, %175 : vector<2x64xf32>
    %184 = arith.mulf %183, %181 : vector<2x64xf32>
    %185 = arith.mulf %175, %163 : vector<2x64xf32>
    %186 = arith.addf %184, %185 : vector<2x64xf32>
    %187 = vector.extract_strided_slice %20 {offsets = [14, 0], sizes = [2, 192], strides = [1, 1]} : vector<16x192xf32> to vector<2x192xf32>
    %cst_32 = arith.constant dense<0.000000e+00> : vector<2x192xf32>
    %188 = tpu.matmul %186, %21, %cst_32 {dimension_numbers = #tpu.dot_dimension_numbers<[1], [0], [0], [1], [0, 0, 1, 1], [], []>} : vector<2x64xf32>, vector<64x192xf32>, vector<2x192xf32> -> vector<2x192xf32>
    %189 = vector.extract_strided_slice %187 {offsets = [0, 0], sizes = [2, 128], strides = [1, 1]} : vector<2x192xf32> to vector<2x128xf32>
    %190 = vector.extract_strided_slice %188 {offsets = [0, 0], sizes = [2, 128], strides = [1, 1]} : vector<2x192xf32> to vector<2x128xf32>
    %191 = arith.addf %189, %190 : vector<2x128xf32>
    %192 = arith.negf %191 : vector<2x128xf32>
    %193 = math.exp %192 : vector<2x128xf32>
    %cst_33 = arith.constant 1.000000e+00 : f32
    %194 = vector.broadcast %cst_33 : f32 to vector<2x128xf32>
    %195 = arith.addf %194, %193 : vector<2x128xf32>
    %196 = arith.divf %194, %195 : vector<2x128xf32>
    %197 = vector.extract_strided_slice %196 {offsets = [0, 0], sizes = [2, 64], strides = [1, 1]} : vector<2x128xf32> to vector<2x64xf32>
    %198 = vector.extract_strided_slice %196 {offsets = [0, 64], sizes = [2, 64], strides = [1, 1]} : vector<2x128xf32> to vector<2x64xf32>
    %199 = vector.extract_strided_slice %187 {offsets = [0, 128], sizes = [2, 64], strides = [1, 1]} : vector<2x192xf32> to vector<2x64xf32>
    %200 = vector.extract_strided_slice %188 {offsets = [0, 128], sizes = [2, 64], strides = [1, 1]} : vector<2x192xf32> to vector<2x64xf32>
    %201 = arith.addf %200, %24 : vector<2x64xf32>
    %202 = arith.mulf %197, %201 : vector<2x64xf32>
    %203 = arith.addf %199, %202 : vector<2x64xf32>
    %204 = math.tanh %203 : vector<2x64xf32>
    %cst_34 = arith.constant 1.000000e+00 : f32
    %205 = vector.broadcast %cst_34 : f32 to vector<2x64xf32>
    %206 = arith.subf %205, %198 : vector<2x64xf32>
    %207 = arith.mulf %206, %204 : vector<2x64xf32>
    %208 = arith.mulf %198, %186 : vector<2x64xf32>
    %209 = arith.addf %207, %208 : vector<2x64xf32>
    %c0_35 = arith.constant 0 : index
    %c0_36 = arith.constant 0 : index
    %210 = vector.load %arg5[%c0_35, %c0_36] : memref<64x32xf32, #tpu.memory_space<vmem>>, vector<64x32xf32>
    %cst_37 = arith.constant dense<0.000000e+00> : vector<2x32xf32>
    %211 = tpu.matmul %209, %210, %cst_37 {dimension_numbers = #tpu.dot_dimension_numbers<[1], [0], [0], [1], [0, 0, 1, 1], [], []>} : vector<2x64xf32>, vector<64x32xf32>, vector<2x32xf32> -> vector<2x32xf32>
    %c0_38 = arith.constant 0 : index
    %c0_39 = arith.constant 0 : index
    %212 = vector.load %arg6[%c0_38, %c0_39] : memref<1x32xf32, #tpu.memory_space<vmem>>, vector<1x32xf32>
    %213 = vector.broadcast %212 : vector<1x32xf32> to vector<2x32xf32>
    %214 = arith.addf %211, %213 : vector<2x32xf32>
    %cst_40 = arith.constant 0.000000e+00 : f32
    %215 = vector.broadcast %cst_40 : f32 to vector<2x32xf32>
    %216 = arith.maximumf %214, %215 : vector<2x32xf32>
    %c0_41 = arith.constant 0 : index
    %c0_42 = arith.constant 0 : index
    %217 = vector.load %arg7[%c0_41, %c0_42] : memref<32x4xf32, #tpu.memory_space<vmem>>, vector<32x4xf32>
    %cst_43 = arith.constant dense<0.000000e+00> : vector<2x4xf32>
    %218 = tpu.matmul %216, %217, %cst_43 {dimension_numbers = #tpu.dot_dimension_numbers<[1], [0], [0], [1], [0, 0, 1, 1], [], []>} : vector<2x32xf32>, vector<32x4xf32>, vector<2x4xf32> -> vector<2x4xf32>
    %c0_44 = arith.constant 0 : index
    %c0_45 = arith.constant 0 : index
    %219 = vector.load %arg8[%c0_44, %c0_45] : memref<1x4xf32, #tpu.memory_space<vmem>>, vector<1x4xf32>
    %220 = vector.broadcast %219 : vector<1x4xf32> to vector<2x4xf32>
    %221 = arith.addf %218, %220 : vector<2x4xf32>
    %c0_46 = arith.constant 0 : index
    %c0_47 = arith.constant 0 : index
    %222 = vector.load %arg9[%c0_46, %c0_47] : memref<2x4xf32, #tpu.memory_space<vmem>>, vector<2x4xf32>
    tpu.vector_store %arg9[%c0_46, %c0_47], %221 {strides = array<i32>} : memref<2x4xf32, #tpu.memory_space<vmem>>, vector<2x4xf32>,
    return
  }
}

</mosaic_0001>

<llo_original>
// kernel: rnn_forward.1
$region0: #{rnn_forward.1}
  #allocation0 [shape = 'u32[]', space=smem, size = 0x4, offset = 0x4, fixed_abs, tag = 'smem constant byte address 0x4 - core index']
  #allocation1 [shape = 'u32[72,128]{1,0:T(1,128)}', space=vmem, size = 0x9000, scoped, tag = 'internal scratch']
  %s0 = inlined_call_operand.vmem [shape: s32[16,2], index: 0, kind: input, shape index: {}]
  %s1 = inlined_call_operand.vmem [shape: f32[32,192], index: 1, kind: input, shape index: {}]
  %s2 = inlined_call_operand.vmem [shape: f32[1,192], index: 2, kind: input, shape index: {}]
  %s3 = inlined_call_operand.vmem [shape: f32[64,192], index: 3, kind: input, shape index: {}]
  %s4 = inlined_call_operand.vmem [shape: f32[1,64], index: 4, kind: input, shape index: {}]
  %s5 = inlined_call_operand.vmem [shape: f32[64,32], index: 5, kind: input, shape index: {}]
  %s6 = inlined_call_operand.vmem [shape: f32[1,32], index: 6, kind: input, shape index: {}]
  %s7 = inlined_call_operand.vmem [shape: f32[32,4], index: 7, kind: input, shape index: {}]
  %s8 = inlined_call_operand.vmem [shape: f32[1,4], index: 8, kind: input, shape index: {}]
  %s9 = inlined_call_operand.hbm [shape: f32[2,4], index: 9, kind: output, shape index: {}]
  %s10 = sld [smem:[#allocation0]]
  $region46: #{rnn_forward.1} parent=0
    _
  %s12 = ssub.s32 1, %s10
  %s13 = scalar_select 0, %s12, %s10
  $region1: #{rnn_forward.1} parent=0
    #allocation2 [shape = 'u8[1024]{0}', space=vmem, size = 0x400, scoped, tag = 'output window, operand 0, single buffered']
    #allocation3 [shape = 's32[1]{0}', space=sflag, size = 0x4, scoped, tag = 'scoped memory for rnn_forward.1']
    %14 = vsyncpa [#allocation3], 0
    // Predicated region
    $region2: #{rnn_forward.1} parent=1 // pred_check
      _
    $region3: #{rnn_forward.1} parent=1 // pred_check_branch
      %16 = sbr.rel (0) target = $region5
    $region4: #{rnn_forward.1} parent=1 // pred_region
      _
    $region5: #{rnn_forward.1} parent=1 // pred_fallthru
      _
    // Predicated region
    $region6: #{rnn_forward.1} parent=1 // pred_check
      _
    $region7: #{rnn_forward.1} parent=1 // pred_check_branch
      %18 = sbr.rel (0) target = $region9
    $region8: #{rnn_forward.1} parent=1 // pred_region
      _
    $region9: #{rnn_forward.1} parent=1 // pred_fallthru
      _
    // Predicated region
    $region10: #{rnn_forward.1} parent=1 // pred_check
      _
    $region11: #{rnn_forward.1} parent=1 // pred_check_branch
      %20 = sbr.rel (0) target = $region13
    $region12: #{rnn_forward.1} parent=1 // pred_region
      _
    $region13: #{rnn_forward.1} parent=1 // pred_fallthru
      _
    // Predicated region
    $region14: #{rnn_forward.1} parent=1 // pred_check
      _
    $region15: #{rnn_forward.1} parent=1 // pred_check_branch
      %22 = sbr.rel (0) target = $region17
    $region16: #{rnn_forward.1} parent=1 // pred_region
      _
    $region17: #{rnn_forward.1} parent=1 // pred_fallthru
      _
    // Predicated region
    $region18: #{rnn_forward.1} parent=1 // pred_check
      _
    $region19: #{rnn_forward.1} parent=1 // pred_check_branch
      %24 = sbr.rel (0) target = $region21
    $region20: #{rnn_forward.1} parent=1 // pred_region
      _
    $region21: #{rnn_forward.1} parent=1 // pred_fallthru
      _
    // Predicated region
    $region22: #{rnn_forward.1} parent=1 // pred_check
      _
    $region23: #{rnn_forward.1} parent=1 // pred_check_branch
      %26 = sbr.rel (0) target = $region25
    $region24: #{rnn_forward.1} parent=1 // pred_region
      _
    $region25: #{rnn_forward.1} parent=1 // pred_fallthru
      _
    // Predicated region
    $region26: #{rnn_forward.1} parent=1 // pred_check
      _
    $region27: #{rnn_forward.1} parent=1 // pred_check_branch
      %28 = sbr.rel (0) target = $region29
    $region28: #{rnn_forward.1} parent=1 // pred_region
      _
    $region29: #{rnn_forward.1} parent=1 // pred_fallthru
      _
    // Predicated region
    $region30: #{rnn_forward.1} parent=1 // pred_check
      _
    $region31: #{rnn_forward.1} parent=1 // pred_check_branch
      %30 = sbr.rel (0) target = $region33
    $region32: #{rnn_forward.1} parent=1 // pred_region
      _
    $region33: #{rnn_forward.1} parent=1 // pred_fallthru
      _
    // Predicated region
    $region34: #{rnn_forward.1} parent=1 // pred_check
      _
    $region35: #{rnn_forward.1} parent=1 // pred_check_branch
      %32 = sbr.rel (0) target = $region37
    $region36: #{rnn_forward.1} parent=1 // pred_region
      _
    $region37: #{rnn_forward.1} parent=1 // pred_fallthru
      _
    %v33 = vld [vmem:[%s0] sm:$0xff]
    %v34 = vld [vmem:[%s0 + $0x8] sm:$0xff]
    %v35 = vlaneseq
    %v36 = vand.u32 %v35, 127
    %vm37 = vcmp.lt.s32.totalorder %v36, 16
    %v38 = vadd.s32 %v33, 16
    %v39 = vadd.s32 %v34, 16
    %40 = vset.pattern.permute.xlu0 0
    %41 = vperm.xlu0 %40, %v33
    %v42 = vpop.permute.xlu0 %41
    %43 = vset.pattern.permute.xlu0 0
    %44 = vperm.xlu0 %43, %v34
    %v45 = vpop.permute.xlu0 %44
    %46 = vset.pattern.permute.xlu0 1
    %47 = vperm.xlu0 %46, %v38
    %v48 = vpop.permute.xlu0 %47
    %49 = vset.pattern.permute.xlu0 1
    %50 = vperm.xlu0 %49, %v39
    %v51 = vpop.permute.xlu0 %50
    %v52 = vsel %vm37, %v42, %v48
    %v53 = vsel %vm37, %v45, %v51
    %vm54 = vcmp.eq.s32.totalorder %v36, %v52
    %vm55 = vcmp.eq.s32.totalorder %v36, %v53
    %v56 = vsel %vm54, 1, 0
    %v57 = vsel %vm55, 1, 0
    %v58 = vcvt.s32.f32 %v56
    %v59 = vcvt.s32.f32 %v57
    %v60 = vld [vmem:[%s1] sm:$0xff]
    %v61 = vld [vmem:[%s1 + $0x8] sm:$0xff]
    %v62 = vld [vmem:[%s1 + $0x10] sm:$0xff]
    %v63 = vld [vmem:[%s1 + $0x18] sm:$0xff]
    %v64 = vld [vmem:[%s1 + $0x20] sm:$0xff]
    %v65 = vld [vmem:[%s1 + $0x28] sm:$0xff]
    %v66 = vld [vmem:[%s1 + $0x30] sm:$0xff]
    %v67 = vld [vmem:[%s1 + $0x38] sm:$0xff]
    %v68 = vld [vmem:[%s2] sm:$0x3]
    %v70 = vperm.slane %v68, 0
    %v71 = vperm.slane %v68, 1
    %vm74 = vcmask 261120
    %v76 = vsel %vm74, %v58, 0
    %v79 = vsel %vm74, %v59, 0
    %81 = vmatpush.msra.mxu0 0.0
    %82 = vmatpush.msra.mxu0 0.0
    %83 = vmatpush.msra.mxu0 0.0
    %84 = vmatpush.msra.mxu0 0.0
    %85 = vmatpush.msra.mxu0 0.0
    %86 = vmatpush.msra.mxu0 0.0
    %87 = vmatpush.msra.mxu0 0.0
    %88 = vmatpush.msra.mxu0 0.0
    %89 = vmatpush.msra.mxu0 0.0
    %90 = vmatpush.msra.mxu0 0.0
    %91 = vmatpush.msra.mxu0 0.0
    %92 = vmatpush.msra.mxu0 0.0
    %93 = vmatpush.msra.mxu0 %v66
    %94 = vmatpush.msra.mxu0 %v64
    %95 = vmatpush.msra.mxu0 %v62
    %96 = vmatpush.msra.mxu0 %v60
    %97 = vmatmul.f32.gmra.mxu0 %v76
    %v98 = vpop.f32.mrf.mxu0
    %v99 = vadd.f32 %v70, %v98
    %100 = vmatmul.f32.gmra.mxu0 %v79
    %v101 = vpop.f32.mrf.mxu0
    %v102 = vadd.f32 %v70, %v101
    %103 = vdwg.mxu0
    %104 = vmatpush.msra.mxu0 0.0
    %105 = vmatpush.msra.mxu0 0.0
    %106 = vmatpush.msra.mxu0 0.0
    %107 = vmatpush.msra.mxu0 0.0
    %108 = vmatpush.msra.mxu0 0.0
    %109 = vmatpush.msra.mxu0 0.0
    %110 = vmatpush.msra.mxu0 0.0
    %111 = vmatpush.msra.mxu0 0.0
    %112 = vmatpush.msra.mxu0 0.0
    %113 = vmatpush.msra.mxu0 0.0
    %114 = vmatpush.msra.mxu0 0.0
    %115 = vmatpush.msra.mxu0 0.0
    %116 = vmatpush.msra.mxu0 %v67
    %117 = vmatpush.msra.mxu0 %v65
    %118 = vmatpush.msra.mxu0 %v63
    %119 = vmatpush.msra.mxu0 %v61
    %120 = vmatmul.f32.gmra.mxu0 %v76
    %v121 = vpop.f32.mrf.mxu0
    %v122 = vadd.f32 %v71, %v121
    %123 = vmatmul.f32.gmra.mxu0 %v79
    %v124 = vpop.f32.mrf.mxu0
    %v125 = vadd.f32 %v71, %v124
    %126 = vdwg.mxu0
    %v127 = vld [vmem:[%s3] sm:$0xff]
    %v128 = vld [vmem:[%s3 + $0x8] sm:$0xff]
    %v129 = vld [vmem:[%s3 + $0x10] sm:$0xff]
    %v130 = vld [vmem:[%s3 + $0x18] sm:$0xff]
    %v131 = vld [vmem:[%s3 + $0x20] sm:$0xff]
    %v132 = vld [vmem:[%s3 + $0x28] sm:$0xff]
    %v133 = vld [vmem:[%s3 + $0x30] sm:$0xff]
    %v134 = vld [vmem:[%s3 + $0x38] sm:$0xff]
    %v135 = vld [vmem:[%s3 + $0x40] sm:$0xff]
    %v136 = vld [vmem:[%s3 + $0x48] sm:$0xff]
    %v137 = vld [vmem:[%s3 + $0x50] sm:$0xff]
    %v138 = vld [vmem:[%s3 + $0x58] sm:$0xff]
    %v139 = vld [vmem:[%s3 + $0x60] sm:$0xff]
    %v140 = vld [vmem:[%s3 + $0x68] sm:$0xff]
    %v141 = vld [vmem:[%s3 + $0x70] sm:$0xff]
    %v142 = vld [vmem:[%s3 + $0x78] sm:$0xff]
    %v143 = vld [vmem:[%s4] sm:$0x1]
    %v145 = vperm.slane %v143, 0
    %vm147 = vcmask 523264
    %v149 = vsel %vm147, 0.0, 0
    %151 = vmatpush.msra.mxu0 0.0
    %152 = vmatpush.msra.mxu0 0.0
    %153 = vmatpush.msra.mxu0 0.0
    %154 = vmatpush.msra.mxu0 0.0
    %155 = vmatpush.msra.mxu0 0.0
    %156 = vmatpush.msra.mxu0 0.0
    %157 = vmatpush.msra.mxu0 0.0
    %158 = vmatpush.msra.mxu0 0.0
    %159 = vmatpush.msra.mxu0 %v141
    %160 = vmatpush.msra.mxu0 %v139
    %161 = vmatpush.msra.mxu0 %v137
    %162 = vmatpush.msra.mxu0 %v135
    %163 = vmatpush.msra.mxu0 %v133
    %164 = vmatpush.msra.mxu0 %v131
    %165 = vmatpush.msra.mxu0 %v129
    %166 = vmatpush.msra.mxu0 %v127
    %167 = vmatmul.f32.gmra.mxu0 %v149
    %v168 = vpop.f32.mrf.mxu0
    %v169 = vadd.f32 0.0, %v168
    %170 = vdwg.mxu0
    %171 = vmatpush.msra.mxu0 0.0
    %172 = vmatpush.msra.mxu0 0.0
    %173 = vmatpush.msra.mxu0 0.0
    %174 = vmatpush.msra.mxu0 0.0
    %175 = vmatpush.msra.mxu0 0.0
    %176 = vmatpush.msra.mxu0 0.0
    %177 = vmatpush.msra.mxu0 0.0
    %178 = vmatpush.msra.mxu0 0.0
    %179 = vmatpush.msra.mxu0 %v142
    %180 = vmatpush.msra.mxu0 %v140
    %181 = vmatpush.msra.mxu0 %v138
    %182 = vmatpush.msra.mxu0 %v136
    %183 = vmatpush.msra.mxu0 %v134
    %184 = vmatpush.msra.mxu0 %v132
    %185 = vmatpush.msra.mxu0 %v130
    %186 = vmatpush.msra.mxu0 %v128
    %187 = vmatmul.f32.gmra.mxu0 %v149
    %v188 = vpop.f32.mrf.mxu0
    %v189 = vadd.f32 0.0, %v188
    %190 = vdwg.mxu0
    %v191 = vadd.f32 %v99, %v169
    %v192 = vxor.u32 %v191, 2147483648
    %v193 = vmul.f32 %v192, 1.442695
    %v194 = vpow.pop %v193
    %v195 = vadd.f32 %v194, 1.0
    %v196 = vrcp.pop %v195
    %v197 = vmul.f32 %v195, %v196
    %v198 = vsub.f32 1.0, %v197
    %v199 = vmul.f32 %v196, %v198
    %v200 = vadd.f32 %v196, %v199
    %vm201 = vweird.f32 %v195
    %vm202 = vweird.f32 %v196
    %vm203 = vmor %vm201, %vm202
    %v204 = vsel %vm203, %v196, %v200
    %v205 = vand.u32 2147483647, %v195
    %vm206 = vcmp.eq.f32.partialorder %v205, 8.507059e+37
    %v207 = vand.u32 %v195, 2147483648
    %v208 = vor.u32 1.1754944e-38, %v207
    %v209 = vsel %vm206, %v208, %v204
    %v210 = vmul.f32 1.0, %v209
    %v211 = vadd.f32 %v189, %v145
    %v212 = vmul.f32 %v210, %v211
    %v213 = vadd.f32 %v122, %v212
    %v214 = vtanh.pop %v213
    %v215 = vsub.f32 1.0, %v210
    %217 = vrot.lane.b32.xlu0 %v214, 64
    %v218 = vpop.permute.xlu0 %217
    %v220 = vmul.f32 %v215, %v218
    %v221 = vmul.f32 %v210, 0.0
    %v222 = vadd.f32 %v220, %v221
    %224 = vrot.lane.b32.xlu0 %v222, 64
    %v225 = vpop.permute.xlu0 %224
    %v226 = vsel %vm147, %v225, 0
    %228 = vmatpush.msra.mxu0 0.0
    %229 = vmatpush.msra.mxu0 0.0
    %230 = vmatpush.msra.mxu0 0.0
    %231 = vmatpush.msra.mxu0 0.0
    %232 = vmatpush.msra.mxu0 0.0
    %233 = vmatpush.msra.mxu0 0.0
    %234 = vmatpush.msra.mxu0 0.0
    %235 = vmatpush.msra.mxu0 0.0
    %236 = vmatpush.msra.mxu0 %v141
    %237 = vmatpush.msra.mxu0 %v139
    %238 = vmatpush.msra.mxu0 %v137
    %239 = vmatpush.msra.mxu0 %v135
    %240 = vmatpush.msra.mxu0 %v133
    %241 = vmatpush.msra.mxu0 %v131
    %242 = vmatpush.msra.mxu0 %v129
    %243 = vmatpush.msra.mxu0 %v127
    %244 = vmatmul.f32.gmra.mxu0 %v226
    %v245 = vpop.f32.mrf.mxu0
    %v246 = vadd.f32 0.0, %v245
    %247 = vdwg.mxu0
    %248 = vmatpush.msra.mxu0 0.0
    %249 = vmatpush.msra.mxu0 0.0
    %250 = vmatpush.msra.mxu0 0.0
    %251 = vmatpush.msra.mxu0 0.0
    %252 = vmatpush.msra.mxu0 0.0
    %253 = vmatpush.msra.mxu0 0.0
    %254 = vmatpush.msra.mxu0 0.0
    %255 = vmatpush.msra.mxu0 0.0
    %256 = vmatpush.msra.mxu0 %v142
    %257 = vmatpush.msra.mxu0 %v140
    %258 = vmatpush.msra.mxu0 %v138
    %259 = vmatpush.msra.mxu0 %v136
    %260 = vmatpush.msra.mxu0 %v134
    %261 = vmatpush.msra.mxu0 %v132
    %262 = vmatpush.msra.mxu0 %v130
    %263 = vmatpush.msra.mxu0 %v128
    %264 = vmatmul.f32.gmra.mxu0 %v226
    %v265 = vpop.f32.mrf.mxu0
    %v266 = vadd.f32 0.0, %v265
    %267 = vdwg.mxu0
    %v269 = vrot.slane %v246, 6
    %v271 = vadd.f32 %v99, %v269
    %v272 = vxor.u32 %v271, 2147483648
    %v273 = vmul.f32 %v272, 1.442695
    %v274 = vpow.pop %v273
    %v275 = vadd.f32 %v274, 1.0
    %v276 = vrcp.pop %v275
    %v277 = vmul.f32 %v275, %v276
    %v278 = vsub.f32 1.0, %v277
    %v279 = vmul.f32 %v276, %v278
    %v280 = vadd.f32 %v276, %v279
    %vm281 = vweird.f32 %v275
    %vm282 = vweird.f32 %v276
    %vm283 = vmor %vm281, %vm282
    %v284 = vsel %vm283, %v276, %v280
    %v285 = vand.u32 2147483647, %v275
    %vm286 = vcmp.eq.f32.partialorder %v285, 8.507059e+37
    %v287 = vand.u32 %v275, 2147483648
    %v288 = vor.u32 1.1754944e-38, %v287
    %v289 = vsel %vm286, %v288, %v284
    %v290 = vmul.f32 1.0, %v289
    %v291 = vadd.f32 %v266, %v145
    %v293 = vrot.slane %v291, 6
    %v295 = vmul.f32 %v290, %v293
    %v296 = vadd.f32 %v122, %v295
    %v297 = vtanh.pop %v296
    %v298 = vsub.f32 1.0, %v290
    %300 = vrot.lane.b32.xlu0 %v297, 64
    %v301 = vpop.permute.xlu0 %300
    %v303 = vmul.f32 %v298, %v301
    %v304 = vrot.slane %v222, 6
    %v306 = vmul.f32 %v290, %v304
    %v307 = vadd.f32 %v303, %v306
    %v309 = vrot.slane %v307, 2
    %310 = vrot.lane.b32.xlu0 %v309, 64
    %v311 = vpop.permute.xlu0 %310
    %v312 = vsel %vm147, %v311, 0
    %314 = vmatpush.msra.mxu0 0.0
    %315 = vmatpush.msra.mxu0 0.0
    %316 = vmatpush.msra.mxu0 0.0
    %317 = vmatpush.msra.mxu0 0.0
    %318 = vmatpush.msra.mxu0 0.0
    %319 = vmatpush.msra.mxu0 0.0
    %320 = vmatpush.msra.mxu0 0.0
    %321 = vmatpush.msra.mxu0 0.0
    %322 = vmatpush.msra.mxu0 %v141
    %323 = vmatpush.msra.mxu0 %v139
    %324 = vmatpush.msra.mxu0 %v137
    %325 = vmatpush.msra.mxu0 %v135
    %326 = vmatpush.msra.mxu0 %v133
    %327 = vmatpush.msra.mxu0 %v131
    %328 = vmatpush.msra.mxu0 %v129
    %329 = vmatpush.msra.mxu0 %v127
    %330 = vmatmul.f32.gmra.mxu0 %v312
    %v331 = vpop.f32.mrf.mxu0
    %v332 = vadd.f32 0.0, %v331
    %333 = vdwg.mxu0
    %334 = vmatpush.msra.mxu0 0.0
    %335 = vmatpush.msra.mxu0 0.0
    %336 = vmatpush.msra.mxu0 0.0
    %337 = vmatpush.msra.mxu0 0.0
    %338 = vmatpush.msra.mxu0 0.0
    %339 = vmatpush.msra.mxu0 0.0
    %340 = vmatpush.msra.mxu0 0.0
    %341 = vmatpush.msra.mxu0 0.0
    %342 = vmatpush.msra.mxu0 %v142
    %343 = vmatpush.msra.mxu0 %v140
    %344 = vmatpush.msra.mxu0 %v138
    %345 = vmatpush.msra.mxu0 %v136
    %346 = vmatpush.msra.mxu0 %v134
    %347 = vmatpush.msra.mxu0 %v132
    %348 = vmatpush.msra.mxu0 %v130
    %349 = vmatpush.msra.mxu0 %v128
    %350 = vmatmul.f32.gmra.mxu0 %v312
    %v351 = vpop.f32.mrf.mxu0
    %v352 = vadd.f32 0.0, %v351
    %353 = vdwg.mxu0
    %v355 = vrot.slane %v332, 4
    %v357 = vadd.f32 %v99, %v355
    %v358 = vxor.u32 %v357, 2147483648
    %v359 = vmul.f32 %v358, 1.442695
    %v360 = vpow.pop %v359
    %v361 = vadd.f32 %v360, 1.0
    %v362 = vrcp.pop %v361
    %v363 = vmul.f32 %v361, %v362
    %v364 = vsub.f32 1.0, %v363
    %v365 = vmul.f32 %v362, %v364
    %v366 = vadd.f32 %v362, %v365
    %vm367 = vweird.f32 %v361
    %vm368 = vweird.f32 %v362
    %vm369 = vmor %vm367, %vm368
    %v370 = vsel %vm369, %v362, %v366
    %v371 = vand.u32 2147483647, %v361
    %vm372 = vcmp.eq.f32.partialorder %v371, 8.507059e+37
    %v373 = vand.u32 %v361, 2147483648
    %v374 = vor.u32 1.1754944e-38, %v373
    %v375 = vsel %vm372, %v374, %v370
    %v376 = vmul.f32 1.0, %v375
    %v377 = vadd.f32 %v352, %v145
    %v379 = vrot.slane %v377, 4
    %v381 = vmul.f32 %v376, %v379
    %v382 = vadd.f32 %v122, %v381
    %v383 = vtanh.pop %v382
    %v384 = vsub.f32 1.0, %v376
    %386 = vrot.lane.b32.xlu0 %v383, 64
    %v387 = vpop.permute.xlu0 %386
    %v389 = vmul.f32 %v384, %v387
    %v390 = vrot.slane %v307, 6
    %v392 = vmul.f32 %v376, %v390
    %v393 = vadd.f32 %v389, %v392
    %v395 = vrot.slane %v393, 4
    %396 = vrot.lane.b32.xlu0 %v395, 64
    %v397 = vpop.permute.xlu0 %396
    %v398 = vsel %vm147, %v397, 0
    %400 = vmatpush.msra.mxu0 0.0
    %401 = vmatpush.msra.mxu0 0.0
    %402 = vmatpush.msra.mxu0 0.0
    %403 = vmatpush.msra.mxu0 0.0
    %404 = vmatpush.msra.mxu0 0.0
    %405 = vmatpush.msra.mxu0 0.0
    %406 = vmatpush.msra.mxu0 0.0
    %407 = vmatpush.msra.mxu0 0.0
    %408 = vmatpush.msra.mxu0 %v141
    %409 = vmatpush.msra.mxu0 %v139
    %410 = vmatpush.msra.mxu0 %v137
    %411 = vmatpush.msra.mxu0 %v135
    %412 = vmatpush.msra.mxu0 %v133
    %413 = vmatpush.msra.mxu0 %v131
    %414 = vmatpush.msra.mxu0 %v129
    %415 = vmatpush.msra.mxu0 %v127
    %416 = vmatmul.f32.gmra.mxu0 %v398
    %v417 = vpop.f32.mrf.mxu0
    %v418 = vadd.f32 0.0, %v417
    %419 = vdwg.mxu0
    %420 = vmatpush.msra.mxu0 0.0
    %421 = vmatpush.msra.mxu0 0.0
    %422 = vmatpush.msra.mxu0 0.0
    %423 = vmatpush.msra.mxu0 0.0
    %424 = vmatpush.msra.mxu0 0.0
    %425 = vmatpush.msra.mxu0 0.0
    %426 = vmatpush.msra.mxu0 0.0
    %427 = vmatpush.msra.mxu0 0.0
    %428 = vmatpush.msra.mxu0 %v142
    %429 = vmatpush.msra.mxu0 %v140
    %430 = vmatpush.msra.mxu0 %v138
    %431 = vmatpush.msra.mxu0 %v136
    %432 = vmatpush.msra.mxu0 %v134
    %433 = vmatpush.msra.mxu0 %v132
    %434 = vmatpush.msra.mxu0 %v130
    %435 = vmatpush.msra.mxu0 %v128
    %436 = vmatmul.f32.gmra.mxu0 %v398
    %v437 = vpop.f32.mrf.mxu0
    %v438 = vadd.f32 0.0, %v437
    %439 = vdwg.mxu0
    %v441 = vrot.slane %v418, 2
    %v443 = vadd.f32 %v99, %v441
    %v444 = vxor.u32 %v443, 2147483648
    %v445 = vmul.f32 %v444, 1.442695
    %v446 = vpow.pop %v445
    %v447 = vadd.f32 %v446, 1.0
    %v448 = vrcp.pop %v447
    %v449 = vmul.f32 %v447, %v448
    %v450 = vsub.f32 1.0, %v449
    %v451 = vmul.f32 %v448, %v450
    %v452 = vadd.f32 %v448, %v451
    %vm453 = vweird.f32 %v447
    %vm454 = vweird.f32 %v448
    %vm455 = vmor %vm453, %vm454
    %v456 = vsel %vm455, %v448, %v452
    %v457 = vand.u32 2147483647, %v447
    %vm458 = vcmp.eq.f32.partialorder %v457, 8.507059e+37
    %v459 = vand.u32 %v447, 2147483648
    %v460 = vor.u32 1.1754944e-38, %v459
    %v461 = vsel %vm458, %v460, %v456
    %v462 = vmul.f32 1.0, %v461
    %v463 = vadd.f32 %v438, %v145
    %v465 = vrot.slane %v463, 2
    %v467 = vmul.f32 %v462, %v465
    %v468 = vadd.f32 %v122, %v467
    %v469 = vtanh.pop %v468
    %v470 = vsub.f32 1.0, %v462
    %472 = vrot.lane.b32.xlu0 %v469, 64
    %v473 = vpop.permute.xlu0 %472
    %v475 = vmul.f32 %v470, %v473
    %v476 = vrot.slane %v393, 6
    %v478 = vmul.f32 %v462, %v476
    %v479 = vadd.f32 %v475, %v478
    %v481 = vrot.slane %v479, 6
    %482 = vrot.lane.b32.xlu0 %v481, 64
    %v483 = vpop.permute.xlu0 %482
    %v484 = vsel %vm147, %v483, 0
    %486 = vmatpush.msra.mxu0 0.0
    %487 = vmatpush.msra.mxu0 0.0
    %488 = vmatpush.msra.mxu0 0.0
    %489 = vmatpush.msra.mxu0 0.0
    %490 = vmatpush.msra.mxu0 0.0
    %491 = vmatpush.msra.mxu0 0.0
    %492 = vmatpush.msra.mxu0 0.0
    %493 = vmatpush.msra.mxu0 0.0
    %494 = vmatpush.msra.mxu0 %v141
    %495 = vmatpush.msra.mxu0 %v139
    %496 = vmatpush.msra.mxu0 %v137
    %497 = vmatpush.msra.mxu0 %v135
    %498 = vmatpush.msra.mxu0 %v133
    %499 = vmatpush.msra.mxu0 %v131
    %500 = vmatpush.msra.mxu0 %v129
    %501 = vmatpush.msra.mxu0 %v127
    %502 = vmatmul.f32.gmra.mxu0 %v484
    %v503 = vpop.f32.mrf.mxu0
    %v504 = vadd.f32 0.0, %v503
    %505 = vdwg.mxu0
    %506 = vmatpush.msra.mxu0 0.0
    %507 = vmatpush.msra.mxu0 0.0
    %508 = vmatpush.msra.mxu0 0.0
    %509 = vmatpush.msra.mxu0 0.0
    %510 = vmatpush.msra.mxu0 0.0
    %511 = vmatpush.msra.mxu0 0.0
    %512 = vmatpush.msra.mxu0 0.0
    %513 = vmatpush.msra.mxu0 0.0
    %514 = vmatpush.msra.mxu0 %v142
    %515 = vmatpush.msra.mxu0 %v140
    %516 = vmatpush.msra.mxu0 %v138
    %517 = vmatpush.msra.mxu0 %v136
    %518 = vmatpush.msra.mxu0 %v134
    %519 = vmatpush.msra.mxu0 %v132
    %520 = vmatpush.msra.mxu0 %v130
    %521 = vmatpush.msra.mxu0 %v128
    %522 = vmatmul.f32.gmra.mxu0 %v484
    %v523 = vpop.f32.mrf.mxu0
    %v524 = vadd.f32 0.0, %v523
    %525 = vdwg.mxu0
    %v526 = vadd.f32 %v102, %v504
    %v527 = vxor.u32 %v526, 2147483648
    %v528 = vmul.f32 %v527, 1.442695
    %v529 = vpow.pop %v528
    %v530 = vadd.f32 %v529, 1.0
    %v531 = vrcp.pop %v530
    %v532 = vmul.f32 %v530, %v531
    %v533 = vsub.f32 1.0, %v532
    %v534 = vmul.f32 %v531, %v533
    %v535 = vadd.f32 %v531, %v534
    %vm536 = vweird.f32 %v530
    %vm537 = vweird.f32 %v531
    %vm538 = vmor %vm536, %vm537
    %v539 = vsel %vm538, %v531, %v535
    %v540 = vand.u32 2147483647, %v530
    %vm541 = vcmp.eq.f32.partialorder %v540, 8.507059e+37
    %v542 = vand.u32 %v530, 2147483648
    %v543 = vor.u32 1.1754944e-38, %v542
    %v544 = vsel %vm541, %v543, %v539
    %v545 = vmul.f32 1.0, %v544
    %v546 = vadd.f32 %v524, %v145
    %v547 = vmul.f32 %v545, %v546
    %v548 = vadd.f32 %v125, %v547
    %v549 = vtanh.pop %v548
    %v550 = vsub.f32 1.0, %v545
    %552 = vrot.lane.b32.xlu0 %v549, 64
    %v553 = vpop.permute.xlu0 %552
    %v555 = vmul.f32 %v550, %v553
    %v557 = vmul.f32 %v545, %v481
    %v558 = vadd.f32 %v555, %v557
    %560 = vrot.lane.b32.xlu0 %v558, 64
    %v561 = vpop.permute.xlu0 %560
    %v562 = vsel %vm147, %v561, 0
    %564 = vmatpush.msra.mxu0 0.0
    %565 = vmatpush.msra.mxu0 0.0
    %566 = vmatpush.msra.mxu0 0.0
    %567 = vmatpush.msra.mxu0 0.0
    %568 = vmatpush.msra.mxu0 0.0
    %569 = vmatpush.msra.mxu0 0.0
    %570 = vmatpush.msra.mxu0 0.0
    %571 = vmatpush.msra.mxu0 0.0
    %572 = vmatpush.msra.mxu0 %v141
    %573 = vmatpush.msra.mxu0 %v139
    %574 = vmatpush.msra.mxu0 %v137
    %575 = vmatpush.msra.mxu0 %v135
    %576 = vmatpush.msra.mxu0 %v133
    %577 = vmatpush.msra.mxu0 %v131
    %578 = vmatpush.msra.mxu0 %v129
    %579 = vmatpush.msra.mxu0 %v127
    %580 = vmatmul.f32.gmra.mxu0 %v562
    %v581 = vpop.f32.mrf.mxu0
    %v582 = vadd.f32 0.0, %v581
    %583 = vdwg.mxu0
    %584 = vmatpush.msra.mxu0 0.0
    %585 = vmatpush.msra.mxu0 0.0
    %586 = vmatpush.msra.mxu0 0.0
    %587 = vmatpush.msra.mxu0 0.0
    %588 = vmatpush.msra.mxu0 0.0
    %589 = vmatpush.msra.mxu0 0.0
    %590 = vmatpush.msra.mxu0 0.0
    %591 = vmatpush.msra.mxu0 0.0
    %592 = vmatpush.msra.mxu0 %v142
    %593 = vmatpush.msra.mxu0 %v140
    %594 = vmatpush.msra.mxu0 %v138
    %595 = vmatpush.msra.mxu0 %v136
    %596 = vmatpush.msra.mxu0 %v134
    %597 = vmatpush.msra.mxu0 %v132
    %598 = vmatpush.msra.mxu0 %v130
    %599 = vmatpush.msra.mxu0 %v128
    %600 = vmatmul.f32.gmra.mxu0 %v562
    %v601 = vpop.f32.mrf.mxu0
    %v602 = vadd.f32 0.0, %v601
    %603 = vdwg.mxu0
    %v605 = vrot.slane %v582, 6
    %v607 = vadd.f32 %v102, %v605
    %v608 = vxor.u32 %v607, 2147483648
    %v609 = vmul.f32 %v608, 1.442695
    %v610 = vpow.pop %v609
    %v611 = vadd.f32 %v610, 1.0
    %v612 = vrcp.pop %v611
    %v613 = vmul.f32 %v611, %v612
    %v614 = vsub.f32 1.0, %v613
    %v615 = vmul.f32 %v612, %v614
    %v616 = vadd.f32 %v612, %v615
    %vm617 = vweird.f32 %v611
    %vm618 = vweird.f32 %v612
    %vm619 = vmor %vm617, %vm618
    %v620 = vsel %vm619, %v612, %v616
    %v621 = vand.u32 2147483647, %v611
    %vm622 = vcmp.eq.f32.partialorder %v621, 8.507059e+37
    %v623 = vand.u32 %v611, 2147483648
    %v624 = vor.u32 1.1754944e-38, %v623
    %v625 = vsel %vm622, %v624, %v620
    %v626 = vmul.f32 1.0, %v625
    %v627 = vadd.f32 %v602, %v145
    %v629 = vrot.slane %v627, 6
    %v631 = vmul.f32 %v626, %v629
    %v632 = vadd.f32 %v125, %v631
    %v633 = vtanh.pop %v632
    %v634 = vsub.f32 1.0, %v626
    %636 = vrot.lane.b32.xlu0 %v633, 64
    %v637 = vpop.permute.xlu0 %636
    %v639 = vmul.f32 %v634, %v637
    %v640 = vrot.slane %v558, 6
    %v642 = vmul.f32 %v626, %v640
    %v643 = vadd.f32 %v639, %v642
    %v645 = vrot.slane %v643, 2
    %646 = vrot.lane.b32.xlu0 %v645, 64
    %v647 = vpop.permute.xlu0 %646
    %v648 = vsel %vm147, %v647, 0
    %650 = vmatpush.msra.mxu0 0.0
    %651 = vmatpush.msra.mxu0 0.0
    %652 = vmatpush.msra.mxu0 0.0
    %653 = vmatpush.msra.mxu0 0.0
    %654 = vmatpush.msra.mxu0 0.0
    %655 = vmatpush.msra.mxu0 0.0
    %656 = vmatpush.msra.mxu0 0.0
    %657 = vmatpush.msra.mxu0 0.0
    %658 = vmatpush.msra.mxu0 %v141
    %659 = vmatpush.msra.mxu0 %v139
    %660 = vmatpush.msra.mxu0 %v137
    %661 = vmatpush.msra.mxu0 %v135
    %662 = vmatpush.msra.mxu0 %v133
    %663 = vmatpush.msra.mxu0 %v131
    %664 = vmatpush.msra.mxu0 %v129
    %665 = vmatpush.msra.mxu0 %v127
    %666 = vmatmul.f32.gmra.mxu0 %v648
    %v667 = vpop.f32.mrf.mxu0
    %v668 = vadd.f32 0.0, %v667
    %669 = vdwg.mxu0
    %670 = vmatpush.msra.mxu0 0.0
    %671 = vmatpush.msra.mxu0 0.0
    %672 = vmatpush.msra.mxu0 0.0
    %673 = vmatpush.msra.mxu0 0.0
    %674 = vmatpush.msra.mxu0 0.0
    %675 = vmatpush.msra.mxu0 0.0
    %676 = vmatpush.msra.mxu0 0.0
    %677 = vmatpush.msra.mxu0 0.0
    %678 = vmatpush.msra.mxu0 %v142
    %679 = vmatpush.msra.mxu0 %v140
    %680 = vmatpush.msra.mxu0 %v138
    %681 = vmatpush.msra.mxu0 %v136
    %682 = vmatpush.msra.mxu0 %v134
    %683 = vmatpush.msra.mxu0 %v132
    %684 = vmatpush.msra.mxu0 %v130
    %685 = vmatpush.msra.mxu0 %v128
    %686 = vmatmul.f32.gmra.mxu0 %v648
    %v687 = vpop.f32.mrf.mxu0
    %v688 = vadd.f32 0.0, %v687
    %689 = vdwg.mxu0
    %v691 = vrot.slane %v668, 4
    %v693 = vadd.f32 %v102, %v691
    %v694 = vxor.u32 %v693, 2147483648
    %v695 = vmul.f32 %v694, 1.442695
    %v696 = vpow.pop %v695
    %v697 = vadd.f32 %v696, 1.0
    %v698 = vrcp.pop %v697
    %v699 = vmul.f32 %v697, %v698
    %v700 = vsub.f32 1.0, %v699
    %v701 = vmul.f32 %v698, %v700
    %v702 = vadd.f32 %v698, %v701
    %vm703 = vweird.f32 %v697
    %vm704 = vweird.f32 %v698
    %vm705 = vmor %vm703, %vm704
    %v706 = vsel %vm705, %v698, %v702
    %v707 = vand.u32 2147483647, %v697
    %vm708 = vcmp.eq.f32.partialorder %v707, 8.507059e+37
    %v709 = vand.u32 %v697, 2147483648
    %v710 = vor.u32 1.1754944e-38, %v709
    %v711 = vsel %vm708, %v710, %v706
    %v712 = vmul.f32 1.0, %v711
    %v713 = vadd.f32 %v688, %v145
    %v715 = vrot.slane %v713, 4
    %v717 = vmul.f32 %v712, %v715
    %v718 = vadd.f32 %v125, %v717
    %v719 = vtanh.pop %v718
    %v720 = vsub.f32 1.0, %v712
    %722 = vrot.lane.b32.xlu0 %v719, 64
    %v723 = vpop.permute.xlu0 %722
    %v725 = vmul.f32 %v720, %v723
    %v726 = vrot.slane %v643, 6
    %v728 = vmul.f32 %v712, %v726
    %v729 = vadd.f32 %v725, %v728
    %v731 = vrot.slane %v729, 4
    %732 = vrot.lane.b32.xlu0 %v731, 64
    %v733 = vpop.permute.xlu0 %732
    %v734 = vsel %vm147, %v733, 0
    %736 = vmatpush.msra.mxu0 0.0
    %737 = vmatpush.msra.mxu0 0.0
    %738 = vmatpush.msra.mxu0 0.0
    %739 = vmatpush.msra.mxu0 0.0
    %740 = vmatpush.msra.mxu0 0.0
    %741 = vmatpush.msra.mxu0 0.0
    %742 = vmatpush.msra.mxu0 0.0
    %743 = vmatpush.msra.mxu0 0.0
    %744 = vmatpush.msra.mxu0 %v141
    %745 = vmatpush.msra.mxu0 %v139
    %746 = vmatpush.msra.mxu0 %v137
    %747 = vmatpush.msra.mxu0 %v135
    %748 = vmatpush.msra.mxu0 %v133
    %749 = vmatpush.msra.mxu0 %v131
    %750 = vmatpush.msra.mxu0 %v129
    %751 = vmatpush.msra.mxu0 %v127
    %752 = vmatmul.f32.gmra.mxu0 %v734
    %v753 = vpop.f32.mrf.mxu0
    %v754 = vadd.f32 0.0, %v753
    %755 = vdwg.mxu0
    %756 = vmatpush.msra.mxu0 0.0
    %757 = vmatpush.msra.mxu0 0.0
    %758 = vmatpush.msra.mxu0 0.0
    %759 = vmatpush.msra.mxu0 0.0
    %760 = vmatpush.msra.mxu0 0.0
    %761 = vmatpush.msra.mxu0 0.0
    %762 = vmatpush.msra.mxu0 0.0
    %763 = vmatpush.msra.mxu0 0.0
    %764 = vmatpush.msra.mxu0 %v142
    %765 = vmatpush.msra.mxu0 %v140
    %766 = vmatpush.msra.mxu0 %v138
    %767 = vmatpush.msra.mxu0 %v136
    %768 = vmatpush.msra.mxu0 %v134
    %769 = vmatpush.msra.mxu0 %v132
    %770 = vmatpush.msra.mxu0 %v130
    %771 = vmatpush.msra.mxu0 %v128
    %772 = vmatmul.f32.gmra.mxu0 %v734
    %v773 = vpop.f32.mrf.mxu0
    %v774 = vadd.f32 0.0, %v773
    %775 = vdwg.mxu0
    %v777 = vrot.slane %v754, 2
    %v779 = vadd.f32 %v102, %v777
    %v780 = vxor.u32 %v779, 2147483648
    %v781 = vmul.f32 %v780, 1.442695
    %v782 = vpow.pop %v781
    %v783 = vadd.f32 %v782, 1.0
    %v784 = vrcp.pop %v783
    %v785 = vmul.f32 %v783, %v784
    %v786 = vsub.f32 1.0, %v785
    %v787 = vmul.f32 %v784, %v786
    %v788 = vadd.f32 %v784, %v787
    %vm789 = vweird.f32 %v783
    %vm790 = vweird.f32 %v784
    %vm791 = vmor %vm789, %vm790
    %v792 = vsel %vm791, %v784, %v788
    %v793 = vand.u32 2147483647, %v783
    %vm794 = vcmp.eq.f32.partialorder %v793, 8.507059e+37
    %v795 = vand.u32 %v783, 2147483648
    %v796 = vor.u32 1.1754944e-38, %v795
    %v797 = vsel %vm794, %v796, %v792
    %v798 = vmul.f32 1.0, %v797
    %v799 = vadd.f32 %v774, %v145
    %v801 = vrot.slane %v799, 2
    %v803 = vmul.f32 %v798, %v801
    %v804 = vadd.f32 %v125, %v803
    %v805 = vtanh.pop %v804
    %v806 = vsub.f32 1.0, %v798
    %808 = vrot.lane.b32.xlu0 %v805, 64
    %v809 = vpop.permute.xlu0 %808
    %v811 = vmul.f32 %v806, %v809
    %v812 = vrot.slane %v729, 6
    %v814 = vmul.f32 %v798, %v812
    %v815 = vadd.f32 %v811, %v814
    %v816 = vld [vmem:[%s5] sm:$0xff]
    %v817 = vld [vmem:[%s5 + $0x8] sm:$0xff]
    %v818 = vld [vmem:[%s5 + $0x10] sm:$0xff]
    %v819 = vld [vmem:[%s5 + $0x18] sm:$0xff]
    %v820 = vld [vmem:[%s5 + $0x20] sm:$0xff]
    %v821 = vld [vmem:[%s5 + $0x28] sm:$0xff]
    %v822 = vld [vmem:[%s5 + $0x30] sm:$0xff]
    %v823 = vld [vmem:[%s5 + $0x38] sm:$0xff]
    %v824 = vld [vmem:[%s6] sm:$0x1]
    %v826 = vperm.slane %v824, 0
    %v829 = vrot.slane %v815, 6
    %830 = vrot.lane.b32.xlu0 %v829, 64
    %v831 = vpop.permute.xlu0 %830
    %v832 = vsel %vm147, %v831, 0
    %834 = vmatpush.msra.mxu0 0.0
    %835 = vmatpush.msra.mxu0 0.0
    %836 = vmatpush.msra.mxu0 0.0
    %837 = vmatpush.msra.mxu0 0.0
    %838 = vmatpush.msra.mxu0 0.0
    %839 = vmatpush.msra.mxu0 0.0
    %840 = vmatpush.msra.mxu0 0.0
    %841 = vmatpush.msra.mxu0 0.0
    %842 = vmatpush.msra.mxu0 %v823
    %843 = vmatpush.msra.mxu0 %v822
    %844 = vmatpush.msra.mxu0 %v821
    %845 = vmatpush.msra.mxu0 %v820
    %846 = vmatpush.msra.mxu0 %v819
    %847 = vmatpush.msra.mxu0 %v818
    %848 = vmatpush.msra.mxu0 %v817
    %849 = vmatpush.msra.mxu0 %v816
    %850 = vmatmul.f32.gmra.mxu0 %v832
    %v851 = vpop.f32.mrf.mxu0
    %v852 = vadd.f32 %v826, %v851
    %853 = vdwg.mxu0
    %v854 = vmax.f32 %v852, 0.0
    %v855 = vld [vmem:[%s7] sm:$0xff]
    %v856 = vld [vmem:[%s7 + $0x8] sm:$0xff]
    %v857 = vld [vmem:[%s7 + $0x10] sm:$0xff]
    %v858 = vld [vmem:[%s7 + $0x18] sm:$0xff]
    %v859 = vld [vmem:[%s8] sm:$0x1]
    %v861 = vperm.slane %v859, 0
    %v864 = vsel %vm74, %v854, 0
    %866 = vmatpush.msra.mxu0 0.0
    %867 = vmatpush.msra.mxu0 0.0
    %868 = vmatpush.msra.mxu0 0.0
    %869 = vmatpush.msra.mxu0 0.0
    %870 = vmatpush.msra.mxu0 0.0
    %871 = vmatpush.msra.mxu0 0.0
    %872 = vmatpush.msra.mxu0 0.0
    %873 = vmatpush.msra.mxu0 0.0
    %874 = vmatpush.msra.mxu0 0.0
    %875 = vmatpush.msra.mxu0 0.0
    %876 = vmatpush.msra.mxu0 0.0
    %877 = vmatpush.msra.mxu0 0.0
    %878 = vmatpush.msra.mxu0 %v858
    %879 = vmatpush.msra.mxu0 %v857
    %880 = vmatpush.msra.mxu0 %v856
    %881 = vmatpush.msra.mxu0 %v855
    %882 = vmatmul.f32.gmra.mxu0 %v864
    %v883 = vpop.f32.mrf.mxu0
    %v884 = vadd.f32 %v861, %v883
    %885 = vdwg.mxu0
    %vm886 = vcmask 25600
    %887 = vst.msk [vmem:[#allocation2] sm:$0x3] %vm886, %v884
    // Predicated region
    $region38: #{rnn_forward.1} parent=1 // pred_check
      _
    $region39: #{rnn_forward.1} parent=1 // pred_check_branch
      %889 = sbr.rel (0) target = $region41
    $region40: #{rnn_forward.1} parent=1 // pred_region
      %891 = vsyncadd [#allocation3], 0
      %s893 = sshll.u32 [#allocation2], 4
      %s894 = int_to_ptr.vmem [resolvable:$true] %s893
      %s895 = sshll.u32 %s9, 4
      %s896 = int_to_ptr.hbm [resolvable:$true] %s895
      %898 = dma.vmem_to_hbm [thread:$0]  %s894, 32, %s896, [#allocation3]
    $region41: #{rnn_forward.1} parent=1 // pred_fallthru
      _
    // Predicated region
    $region42: #{rnn_forward.1} parent=1 // pred_check
      _
    $region43: #{rnn_forward.1} parent=1 // pred_check_branch
      %900 = sbr.rel (0) target = $region45
    $region44: #{rnn_forward.1} parent=1 // pred_region
      %902 = dma.done [#allocation3], 32
    $region45: #{rnn_forward.1} parent=1 // pred_fallthru
      _
    %903 = vsyncpa [#allocation3], 1

</llo_original>
